<compile_context>
chip_gen: v7x
topology: tpu7x:2x2x1
jax: 0.10.0
libtpu: 0.0.40
codegen_flags: <defaults>
</compile_context>

<pallas_src>
import math

import jax
import jax.numpy as jnp
from jax.experimental import pallas as pl
from jax.experimental.pallas import tpu as pltpu


_TARGET_BLOCK_BYTES = 8 * 1024 * 1024   # ~8 MiB blocks (v7x-friendly, fine on v5e/v6e)
_SMALL_TENSOR_BYTES = 2 * 1024 * 1024   # below this a single block is cheapest
_VMEM_LIMIT_BYTES = 48 * 1024 * 1024    # 2 in + 2 out bufs (4 x 8 MiB) + mask + slack;
                                        # raises v5e/v6e scoped default, < v7x 64 MiB phys.


def _locked_dropout_kernel(x_ref, mask_ref, o_ref):
    """Apply the locked (1, lanes) mask to a (tR, lanes) block of x.

    The multiply is done in x.dtype (the PyTorch reference creates the mask in
    x.dtype as well); on v6e/v7x bf16 inputs this uses the native bf16 VALU
    with no upcast/downcast.
    """
    o_ref[...] = x_ref[...] * mask_ref[...]


def _lane_fold(T, BH):
    """Smallest k (dividing T) such that k*BH is a multiple of 128; 1 if none."""
    if BH % 128 == 0:
        return 1
    k = 128 // math.gcd(BH, 128)
    if k > 1 and T % k == 0:
        return k
    return 1


def _choose_tiles(rows, cols, itemsize):
    """Pick (tR, tC) block shape for the lane-dense (rows, cols) view."""
    row_bytes = cols * itemsize
    total_bytes = rows * row_bytes

    # Tiny tensor: one block, one grid step.
    if total_bytes <= _SMALL_TENSOR_BYTES:
        return rows, cols

    # Very wide B*H: even an 8-sublane full-width slab blows the block budget,
    # so tile the lane axis too (tC a multiple of 128 keeps stores lane-dense).
    if 8 * row_bytes > _TARGET_BLOCK_BYTES:
        tC = _TARGET_BLOCK_BYTES // (8 * itemsize)
        tC = max(128, (tC // 128) * 128)
        tC = min(tC, cols)
        tR = 8 if rows >= 8 else rows
        return tR, tC

    # Common case: full-width rows, tile only the time axis.
    tR = _TARGET_BLOCK_BYTES // row_bytes          # >= 8 here by construction
    # Guarantee a multi-step grid so v7x can shard the time axis across its
    # two TensorCores and per-step overhead stays amortized.
    min_steps = 4 if rows >= 32 else 2
    tR = min(tR, -(-rows // min_steps))
    tR = max(8, (tR // 8) * 8)
    return min(tR, rows), cols


def locked_dropout(x, key, train=True, dropout=0.5, inplace=False):
    """JAX/Pallas equivalent of LockedDropout.forward(x, train, dropout).

    x: (T, B, H).  A single Bernoulli(1 - dropout) mask of shape (1, B, H) is
    sampled from `key`, scaled by 1/(1 - dropout), and shared ("locked")
    across the time axis.  inplace=True aliases the output buffer onto the
    (reshaped) input -- only use it if x is never read again afterwards.
    """
    if dropout == 0.0 or not train:
        return x

    keep_prob = 1.0 - dropout
    T, B, H = x.shape
    BH = B * H
    itemsize = jnp.dtype(x.dtype).itemsize

    # Locked mask: one Bernoulli draw per (b, h), values {0, 1/keep_prob},
    # stored in x.dtype (matches the PyTorch mask dtype).
    keep = jax.random.bernoulli(key, p=keep_prob, shape=(1, BH))
    mask = (keep.astype(jnp.float32) * jnp.float32(1.0 / keep_prob)).astype(x.dtype)

    # Lane-dense view: fold k time steps into the lane axis if B*H is not a
    # multiple of 128, so stores are full-width 128-lane vst, not vst.msk.
    k = _lane_fold(T, BH)
    rows, cols = T // k, k * BH
    x2 = x.reshape(rows, cols)
    mask2 = mask if k == 1 else jnp.tile(mask, (1, k))

    tR, tC = _choose_tiles(rows, cols, itemsize)
    grid = (pl.cdiv(rows, tR), pl.cdiv(cols, tC))

    if grid[1] == 1:
        # Mask never changes across the grid: keep it fully resident in VMEM
        # (no pipelining / double-buffering bookkeeping for it).
        mask_spec = pl.BlockSpec(memory_space=pltpu.MemorySpace.VMEM)
    else:
        mask_spec = pl.BlockSpec((1, tC), lambda t, c: (0, c))

    cost = pl.CostEstimate(
        flops=rows * cols,
        transcendentals=0,
        bytes_accessed=2 * rows * cols * itemsize + cols * itemsize,
    )

    out2 = pl.pallas_call(
        _locked_dropout_kernel,
        out_shape=jax.ShapeDtypeStruct((rows, cols), x.dtype),
        grid=grid,
        in_specs=[
            pl.BlockSpec((tR, tC), lambda t, c: (t, c)),   # streamed x blocks
            mask_spec,                                     # locked mask
        ],
        out_specs=pl.BlockSpec((tR, tC), lambda t, c: (t, c)),
        compiler_params=pltpu.CompilerParams(
            # Both grid axes are independent -> shardable across v7x's 2 TCs.
            dimension_semantics=("parallel", "parallel"),
            vmem_limit_bytes=_VMEM_LIMIT_BYTES,
        ),
        cost_estimate=cost,
        input_output_aliases=({0: 0} if inplace else {}),
    )(x2, mask2)

    return out2.reshape(T, B, H)


def _check_semantics(x, out, dropout):
    """Check LockedDropout semantics: values in {0, x/(1-p)}, mask locked over T."""
    keep_prob = 1.0 - dropout
    xf = x.astype(jnp.float32)
    of = out.astype(jnp.float32)
    scaled = xf / keep_prob

    ok_vals = bool(jnp.all(
        jnp.isclose(of, 0.0, atol=1e-6)
        | jnp.isclose(of, scaled, rtol=1e-2, atol=1e-5)))

    # A (b, h) position must never be clearly kept at one time step and
    # clearly dropped at another (ignore near-zero inputs).
    big = jnp.abs(scaled) > 1e-3
    dropped = jnp.isclose(of, 0.0, atol=1e-6) & big
    kept = jnp.isclose(of, scaled, rtol=1e-2, atol=1e-5) & ~dropped & big
    locked = bool(jnp.all(~(jnp.any(dropped, axis=0) & jnp.any(kept, axis=0))))
    return ok_vals, locked


if __name__ == "__main__":
    root = jax.random.PRNGKey(0)
    k_x1, k_m1, k_x2, k_m2, k_x3, k_m3 = jax.random.split(root, 6)
    dropout = 0.5

    # 1) Small f32, B*H = 128 (already lane-dense, single block).
    x1 = jax.random.normal(k_x1, (8, 4, 32), dtype=jnp.float32)
    o1 = jax.block_until_ready(locked_dropout(x1, k_m1, train=True, dropout=dropout))
    ok1, locked1 = _check_semantics(x1, o1, dropout)
    assert ok1, "f32: output values are not {0, x/(1-p)}"
    assert locked1, "f32: dropout mask is not shared across the time axis"

    # 2) bf16, B*H = 96 (not a multiple of 128) -> exercises the lane-fold path.
    x2 = jax.random.normal(k_x2, (8, 2, 48), dtype=jnp.bfloat16)
    o2 = jax.block_until_ready(locked_dropout(x2, k_m2, train=True, dropout=dropout))
    ok2, locked2 = _check_semantics(x2, o2, dropout)
    assert ok2, "bf16: output values are not {0, x/(1-p)}"
    assert locked2, "bf16: dropout mask is not shared across the time axis"

    # 3) f32 large enough (4 MiB) to force a multi-step pipelined time grid.
    x3 = jax.random.normal(k_x3, (2048, 4, 128), dtype=jnp.float32)
    o3 = jax.block_until_ready(locked_dropout(x3, k_m3, train=True, dropout=dropout))
    ok3, locked3 = _check_semantics(x3, o3, dropout)
    assert ok3, "large: output values are not {0, x/(1-p)}"
    assert locked3, "large: dropout mask is not shared across the time axis"

    # Eval / dropout=0 paths pass through unchanged.
    assert bool(jnp.array_equal(
        locked_dropout(x1, k_m1, train=False, dropout=dropout), x1))
    assert bool(jnp.array_equal(
        locked_dropout(x1, k_m1, train=True, dropout=0.0), x1))

    print("KERNEL_OK")
</pallas_src>

<mosaic_0001>
module attributes {stable_mosaic.version = 11 : i64} {
  func.func @_locked_dropout_kernel(%arg0: i32, %arg1: i32, %arg2: memref<8x128xf32, #tpu.memory_space<vmem>>, %arg3: memref<1x128xf32, #tpu.memory_space<vmem>>, %arg4: memref<8x128xf32, #tpu.memory_space<vmem>>) attributes {dimension_semantics = [#tpu.dimension_semantics<parallel>, #tpu.dimension_semantics<parallel>], iteration_bounds = array<i64: 1, 1>, scalar_prefetch = 0 : i64, scratch_operands = 0 : i64, tpu.core_type = #tpu.core_type<tc>, window_params = [{transform_indices = @transform_0, window_bounds = array<i64: 8, 128>}, {pipeline_mode = #tpu.pipeline_mode<synchronous>, transform_indices = @transform_1, window_bounds = array<i64: 1, 128>}, {transform_indices = @transform_2, window_bounds = array<i64: 8, 128>}]} {
    %c0 = arith.constant 0 : index
    %c0_0 = arith.constant 0 : index
    %0 = vector.load %arg2[%c0, %c0_0] : memref<8x128xf32, #tpu.memory_space<vmem>>, vector<8x128xf32>
    %c0_1 = arith.constant 0 : index
    %c0_2 = arith.constant 0 : index
    %1 = vector.load %arg3[%c0_1, %c0_2] : memref<1x128xf32, #tpu.memory_space<vmem>>, vector<1x128xf32>
    %2 = vector.broadcast %1 : vector<1x128xf32> to vector<8x128xf32>
    %3 = arith.mulf %0, %2 : vector<8x128xf32>
    %c0_3 = arith.constant 0 : index
    %c0_4 = arith.constant 0 : index
    %4 = vector.load %arg4[%c0_3, %c0_4] : memref<8x128xf32, #tpu.memory_space<vmem>>, vector<8x128xf32>
    tpu.vector_store %arg4[%c0_3, %c0_4], %3 {strides = array<i32>} : memref<8x128xf32, #tpu.memory_space<vmem>>, vector<8x128xf32>,
    return
  }
  func.func @transform_0(%arg0: i32, %arg1: i32) -> (i32, i32) {
    %c0_i32 = arith.constant 0 : i32
    return %arg0, %arg1 : i32, i32
  }
  func.func @transform_1(%arg0: i32, %arg1: i32) -> (i32, i32) {
    %c0_i32 = arith.constant 0 : i32
    %c0_i32_0 = arith.constant 0 : i32
    %c0_i32_1 = arith.constant 0 : i32
    return %c0_i32, %c0_i32_0 : i32, i32
  }
  func.func @transform_2(%arg0: i32, %arg1: i32) -> (i32, i32) {
    %c0_i32 = arith.constant 0 : i32
    return %arg0, %arg1 : i32, i32
  }
}

</mosaic_0001>

<llo_original>
// kernel: tpu_custom_call.1
$region0: #{tpu_custom_call.1}
  #allocation0 [shape = 'u32[]', space=smem, size = 0x4, offset = 0x4, fixed_abs, tag = 'smem constant byte address 0x4 - core index']
  #allocation1 [shape = 'u32[144,128]{1,0:T(1,128)}', space=vmem, size = 0x12000, scoped, tag = 'internal scratch']
  %s0 = inlined_call_operand.hbm [shape: f32[8,128], index: 0, kind: input, shape index: {}]
  %s1 = inlined_call_operand.vmem [shape: f32[1,128], index: 1, kind: input, shape index: {}]
  %s2 = inlined_call_operand.hbm [shape: f32[8,128], index: 2, kind: output, shape index: {}]
  %s3 = sld [smem:[#allocation0]]
  $region22: #{tpu_custom_call.1} parent=0
    _
  %s5 = ssub.s32 1, %s3
  %s6 = scalar_select 0, %s5, %s3
  $region1: #{tpu_custom_call.1} parent=0
    #allocation2 [shape = 'u8[4096]{0}', space=vmem, size = 0x1000, scoped, tag = 'input window, operand 0, single buffered']
    #allocation3 [shape = 's32[1]{0}', space=sflag, size = 0x4, scoped, tag = 'scoped memory for tpu_custom_call.1']
    #allocation4 [shape = 's32[1]{0}', space=sflag, size = 0x4, scoped, tag = 'scoped memory for tpu_custom_call.1']
    #allocation5 [shape = 'u8[4096]{0}', space=vmem, size = 0x1000, scoped, tag = 'output window, operand 0, single buffered']
    %7 = vsyncpa [#allocation3], 0
    %8 = vsyncpa [#allocation4], 0
    // Predicated region
    $region2: #{tpu_custom_call.1} parent=1 // pred_check
      _
    $region3: #{tpu_custom_call.1} parent=1 // pred_check_branch
      %10 = sbr.rel (0) target = $region5
    $region4: #{tpu_custom_call.1} parent=1 // pred_region
      %s12 = ssub.s32 128, 128
      %13 = vsyncadd [#allocation3], %s12
      %s15 = sshll.u32 [#allocation2], 4
      %s16 = int_to_ptr.vmem [resolvable:$true] %s15
      %18 = dma.hbm_to_vmem [thread:$0]  %s0, 128, %s16, [#allocation3]
    $region5: #{tpu_custom_call.1} parent=1 // pred_fallthru
      _
    // Predicated region
    $region6: #{tpu_custom_call.1} parent=1 // pred_check
      _
    $region7: #{tpu_custom_call.1} parent=1 // pred_check_branch
      %20 = sbr.rel (0) target = $region9
    $region8: #{tpu_custom_call.1} parent=1 // pred_region
      _
    $region9: #{tpu_custom_call.1} parent=1 // pred_fallthru
      _
    // Predicated region
    $region10: #{tpu_custom_call.1} parent=1 // pred_check
      _
    $region11: #{tpu_custom_call.1} parent=1 // pred_check_branch
      %22 = sbr.rel (0) target = $region13
    $region12: #{tpu_custom_call.1} parent=1 // pred_region
      %23 = dma.done [#allocation3], 128
    $region13: #{tpu_custom_call.1} parent=1 // pred_fallthru
      _
    %v24 = vld [vmem:[#allocation2] sm:$0xff]
    %v25 = vld [vmem:[%s1] sm:$0x1]
    %v27 = vlaneseq
    %v28 = vshrl.u32 %v27, 7
    %v29 = vsub.s32 0, %v28
    %v30 = vrot.slane %v25, %v29
    %v32 = vmul.f32 %v24, %v30
    %33 = vst [vmem:[#allocation5] sm:$0xff] %v32
    // Predicated region
    $region14: #{tpu_custom_call.1} parent=1 // pred_check
      _
    $region15: #{tpu_custom_call.1} parent=1 // pred_check_branch
      %35 = sbr.rel (0) target = $region17
    $region16: #{tpu_custom_call.1} parent=1 // pred_region
      %s37 = ssub.s32 128, 128
      %38 = vsyncadd [#allocation4], %s37
      %s40 = sshll.u32 [#allocation5], 4
      %s41 = int_to_ptr.vmem [resolvable:$true] %s40
      %43 = dma.vmem_to_hbm [thread:$0]  %s41, 128, %s2, [#allocation4]
    $region17: #{tpu_custom_call.1} parent=1 // pred_fallthru
      _
    // Predicated region
    $region18: #{tpu_custom_call.1} parent=1 // pred_check
      _
    $region19: #{tpu_custom_call.1} parent=1 // pred_check_branch
      %45 = sbr.rel (0) target = $region21
    $region20: #{tpu_custom_call.1} parent=1 // pred_region
      %46 = dma.done [#allocation4], 128
    $region21: #{tpu_custom_call.1} parent=1 // pred_fallthru
      _
    %47 = vsyncpa [#allocation3], 1
    %48 = vsyncpa [#allocation4], 1

</llo_original>
